<compile_context>
chip_gen: v5e
topology: v5e:2x2
jax: 0.10.0
libtpu: 0.0.40
codegen_flags: <defaults>
</compile_context>

<pallas_src>
import jax
import jax.numpy as jnp
from jax.experimental import pallas as pl
from jax.experimental.pallas import tpu as pltpu


def policy_forward_kernel(x_ref, p_ref, out_ref):
    # x_ref  : [B, 4]    activations                               VMEM
    # p_ref  : [8, 128]  packed parameter slab (see layout above)  VMEM
    # out_ref: [B, 2]                                              VMEM
    in_dim = x_ref.shape[1]           # 4
    out_dim = out_ref.shape[1]        # 2

    x = x_ref[...]                                   # [B, 4]
    w1 = p_ref[0:in_dim, :]                          # [4, 128]
    b1 = p_ref[in_dim : in_dim + 1, :]               # [1, 128]
    w2t = p_ref[in_dim + 1 : in_dim + 1 + out_dim, :]  # [2, 128] lane-dense
    b2 = p_ref[in_dim + 1 + out_dim : in_dim + 2 + out_dim, 0:out_dim]  # [1, 2]

    # ---- fc1 (+ b1): K broadcast multiply-adds on the VPU; MXU skipped ----
    h = b1 + x[:, 0:1] * w1[0:1, :]
    for k in range(1, in_dim):
        h = h + x[:, k : k + 1] * w1[k : k + 1, :]
    h = jnp.maximum(h, 0.0)                          # ReLU, [B, 128]

    # ---- fc2 (N=2): VPU multiply + XLU cross-lane sum per output column ----
    l0 = jnp.sum(h * w2t[0:1, :], axis=-1, keepdims=True)   # [B, 1]
    l1 = jnp.sum(h * w2t[1:2, :], axis=-1, keepdims=True)   # [B, 1]
    logits = jnp.concatenate([l0, l1], axis=-1) + b2         # [B, 2]

    # ---- softmax over dim=0 (batch / sublane axis), matching F.softmax(., dim=0)
    m = jnp.max(logits, axis=0, keepdims=True)       # [1, 2]
    e = jnp.exp(logits - m)                           # [B, 2]
    s = jnp.sum(e, axis=0, keepdims=True)             # [1, 2]
    out_ref[...] = (e / s).astype(out_ref.dtype)      # exact divide (free here)


def pack_params(w1, b1, w2, b2):
    """Pack all parameters into a single (8, 128) f32 slab. Call ONCE at
    parameter-load time, not per forward call."""
    in_dim, hid = w1.shape          # (4, 128)
    out_dim = w2.shape[1]           # 2
    b2_row = jnp.zeros((1, hid), jnp.float32).at[0, :out_dim].set(b2)
    slab = jnp.concatenate(
        [
            w1.astype(jnp.float32),                  # rows 0-3
            b1.reshape(1, hid).astype(jnp.float32),  # row 4
            w2.T.astype(jnp.float32),                # rows 5-6 (lane-dense)
            b2_row,                                  # row 7
        ],
        axis=0,
    )
    assert slab.shape == (in_dim + 1 + out_dim + 1, hid)
    return slab


def policy_forward(x, packed_params, out_dim=2):
    """x: [B, 4] f32, packed_params: [8, 128] f32 -> [B, 2] f32
    (softmax over axis 0, per the PyTorch module)."""
    B, in_dim = x.shape
    hid = packed_params.shape[1]

    cost = pl.CostEstimate(
        flops=2 * B * (in_dim * hid + hid * out_dim),
        transcendentals=B * out_dim,
        bytes_accessed=(B * in_dim + packed_params.size + B * out_dim) * 4,
    )

    return pl.pallas_call(
        policy_forward_kernel,
        out_shape=jax.ShapeDtypeStruct((B, out_dim), jnp.float32),
        in_specs=[
            pl.BlockSpec(memory_space=pltpu.MemorySpace.VMEM),   # x
            pl.BlockSpec(memory_space=pltpu.MemorySpace.VMEM),   # packed slab
        ],
        out_specs=pl.BlockSpec(memory_space=pltpu.MemorySpace.VMEM),
        cost_estimate=cost,
    )(x, packed_params)


def init_params(key):
    """Deterministic init mimicking nn.Linear's default U(-1/sqrt(fan_in), +)."""
    k1, k2, k3, k4 = jax.random.split(key, 4)
    bound1 = 1.0 / jnp.sqrt(4.0)
    bound2 = 1.0 / jnp.sqrt(128.0)
    w1 = jax.random.uniform(k1, (4, 128), jnp.float32, -bound1, bound1)
    b1 = jax.random.uniform(k2, (128,), jnp.float32, -bound1, bound1)
    w2 = jax.random.uniform(k3, (128, 2), jnp.float32, -bound2, bound2)
    b2 = jax.random.uniform(k4, (2,), jnp.float32, -bound2, bound2)
    return w1, b1, w2, b2


def reference_forward(x, w1, b1, w2, b2):
    h = jnp.maximum(x @ w1 + b1, 0.0)
    logits = h @ w2 + b2
    return jax.nn.softmax(logits, axis=0)  # dim=0 as in the PyTorch module


if __name__ == "__main__":
    key = jax.random.PRNGKey(0)
    kx, kp = jax.random.split(key)

    # Small batch of CartPole-like states: [B, 4]
    B = 8
    x = jax.random.normal(kx, (B, 4), jnp.float32)
    w1, b1, w2, b2 = init_params(kp)

    # One-time parameter packing (off the per-call hot path).
    packed = jax.block_until_ready(pack_params(w1, b1, w2, b2))

    out = policy_forward(x, packed)
    out = jax.block_until_ready(out)

    ref = reference_forward(x, w1, b1, w2, b2)
    assert out.shape == (B, 2)
    # exact divide in the softmax -> tight tolerance
    assert jnp.allclose(out, ref, atol=1e-5, rtol=1e-5), (out, ref)

    print("KERNEL_OK")
</pallas_src>

<mosaic_0001>
module attributes {stable_mosaic.version = 11 : i64} {
  func.func @policy_forward_kernel(%arg0: memref<8x4xf32, #tpu.memory_space<vmem>>, %arg1: memref<8x128xf32, #tpu.memory_space<vmem>>, %arg2: memref<8x2xf32, #tpu.memory_space<vmem>>) attributes {dimension_semantics = [], scalar_prefetch = 0 : i64, scratch_operands = 0 : i64, tpu.core_type = #tpu.core_type<tc>} {
    %c0 = arith.constant 0 : index
    %c0_0 = arith.constant 0 : index
    %0 = vector.load %arg0[%c0, %c0_0] : memref<8x4xf32, #tpu.memory_space<vmem>>, vector<8x4xf32>
    %c0_1 = arith.constant 0 : index
    %c0_2 = arith.constant 0 : index
    %1 = vector.load %arg1[%c0_1, %c0_2] : memref<8x128xf32, #tpu.memory_space<vmem>>, vector<4x128xf32>
    %c4 = arith.constant 4 : index
    %c0_3 = arith.constant 0 : index
    %2 = vector.load %arg1[%c4, %c0_3] : memref<8x128xf32, #tpu.memory_space<vmem>>, vector<1x128xf32>
    %c5 = arith.constant 5 : index
    %c0_4 = arith.constant 0 : index
    %3 = vector.load %arg1[%c5, %c0_4] : memref<8x128xf32, #tpu.memory_space<vmem>>, vector<2x128xf32>
    %c7 = arith.constant 7 : index
    %c0_5 = arith.constant 0 : index
    %4 = vector.load %arg1[%c7, %c0_5] : memref<8x128xf32, #tpu.memory_space<vmem>>, vector<1x2xf32>
    %5 = vector.extract_strided_slice %0 {offsets = [0, 0], sizes = [8, 1], strides = [1, 1]} : vector<8x4xf32> to vector<8x1xf32>
    %6 = vector.extract_strided_slice %1 {offsets = [0, 0], sizes = [1, 128], strides = [1, 1]} : vector<4x128xf32> to vector<1x128xf32>
    %7 = vector.broadcast %5 : vector<8x1xf32> to vector<8x128xf32>
    %8 = vector.broadcast %6 : vector<1x128xf32> to vector<8x128xf32>
    %9 = arith.mulf %7, %8 : vector<8x128xf32>
    %10 = vector.broadcast %2 : vector<1x128xf32> to vector<8x128xf32>
    %11 = arith.addf %10, %9 : vector<8x128xf32>
    %12 = vector.extract_strided_slice %0 {offsets = [0, 1], sizes = [8, 1], strides = [1, 1]} : vector<8x4xf32> to vector<8x1xf32>
    %13 = vector.extract_strided_slice %1 {offsets = [1, 0], sizes = [1, 128], strides = [1, 1]} : vector<4x128xf32> to vector<1x128xf32>
    %14 = vector.broadcast %12 : vector<8x1xf32> to vector<8x128xf32>
    %15 = vector.broadcast %13 : vector<1x128xf32> to vector<8x128xf32>
    %16 = arith.mulf %14, %15 : vector<8x128xf32>
    %17 = arith.addf %11, %16 : vector<8x128xf32>
    %18 = vector.extract_strided_slice %0 {offsets = [0, 2], sizes = [8, 1], strides = [1, 1]} : vector<8x4xf32> to vector<8x1xf32>
    %19 = vector.extract_strided_slice %1 {offsets = [2, 0], sizes = [1, 128], strides = [1, 1]} : vector<4x128xf32> to vector<1x128xf32>
    %20 = vector.broadcast %18 : vector<8x1xf32> to vector<8x128xf32>
    %21 = vector.broadcast %19 : vector<1x128xf32> to vector<8x128xf32>
    %22 = arith.mulf %20, %21 : vector<8x128xf32>
    %23 = arith.addf %17, %22 : vector<8x128xf32>
    %24 = vector.extract_strided_slice %0 {offsets = [0, 3], sizes = [8, 1], strides = [1, 1]} : vector<8x4xf32> to vector<8x1xf32>
    %25 = vector.extract_strided_slice %1 {offsets = [3, 0], sizes = [1, 128], strides = [1, 1]} : vector<4x128xf32> to vector<1x128xf32>
    %26 = vector.broadcast %24 : vector<8x1xf32> to vector<8x128xf32>
    %27 = vector.broadcast %25 : vector<1x128xf32> to vector<8x128xf32>
    %28 = arith.mulf %26, %27 : vector<8x128xf32>
    %29 = arith.addf %23, %28 : vector<8x128xf32>
    %cst = arith.constant 0.000000e+00 : f32
    %30 = vector.broadcast %cst : f32 to vector<8x128xf32>
    %31 = arith.maximumf %29, %30 : vector<8x128xf32>
    %32 = vector.extract_strided_slice %3 {offsets = [0, 0], sizes = [1, 128], strides = [1, 1]} : vector<2x128xf32> to vector<1x128xf32>
    %33 = vector.broadcast %32 : vector<1x128xf32> to vector<8x128xf32>
    %34 = arith.mulf %31, %33 : vector<8x128xf32>
    %cst_6 = arith.constant dense<0.000000e+00> : vector<8xf32>
    %35 = vector.multi_reduction <add>, %34, %cst_6 [1] : vector<8x128xf32> to vector<8xf32>
    %36 = vector.shape_cast %35 : vector<8xf32> to vector<8x1xf32>
    %37 = vector.extract_strided_slice %3 {offsets = [1, 0], sizes = [1, 128], strides = [1, 1]} : vector<2x128xf32> to vector<1x128xf32>
    %38 = vector.broadcast %37 : vector<1x128xf32> to vector<8x128xf32>
    %39 = arith.mulf %31, %38 : vector<8x128xf32>
    %cst_7 = arith.constant dense<0.000000e+00> : vector<8xf32>
    %40 = vector.multi_reduction <add>, %39, %cst_7 [1] : vector<8x128xf32> to vector<8xf32>
    %41 = vector.shape_cast %40 : vector<8xf32> to vector<8x1xf32>
    %42 = tpu.concatenate %36, %41 in 1 : vector<8x1xf32>, vector<8x1xf32> -> vector<8x2xf32>
    %43 = vector.broadcast %4 : vector<1x2xf32> to vector<8x2xf32>
    %44 = arith.addf %42, %43 : vector<8x2xf32>
    %cst_8 = arith.constant dense<0xFF800000> : vector<2xf32>
    %45 = vector.multi_reduction <maximumf>, %44, %cst_8 [0] : vector<8x2xf32> to vector<2xf32>
    %46 = vector.shape_cast %45 : vector<2xf32> to vector<1x2xf32>
    %47 = vector.broadcast %46 : vector<1x2xf32> to vector<8x2xf32>
    %48 = arith.subf %44, %47 : vector<8x2xf32>
    %49 = math.exp %48 : vector<8x2xf32>
    %cst_9 = arith.constant dense<0.000000e+00> : vector<2xf32>
    %50 = vector.multi_reduction <add>, %49, %cst_9 [0] : vector<8x2xf32> to vector<2xf32>
    %51 = vector.shape_cast %50 : vector<2xf32> to vector<1x2xf32>
    %52 = vector.broadcast %51 : vector<1x2xf32> to vector<8x2xf32>
    %53 = arith.divf %49, %52 : vector<8x2xf32>
    %c0_10 = arith.constant 0 : index
    %c0_11 = arith.constant 0 : index
    %54 = vector.load %arg2[%c0_10, %c0_11] : memref<8x2xf32, #tpu.memory_space<vmem>>, vector<8x2xf32>
    tpu.vector_store %arg2[%c0_10, %c0_11], %53 {strides = array<i32>} : memref<8x2xf32, #tpu.memory_space<vmem>>, vector<8x2xf32>,
    return
  }
}

</mosaic_0001>

<llo_original>
// kernel: tpu_custom_call.1
$region0: #{tpu_custom_call.1}
  #allocation0 [shape = 'u32[]', space=smem, size = 0x4, offset = 0x4, fixed_abs, tag = 'smem constant byte address 0x4 - core index']
  #allocation1 [shape = 'u32[72,128]{1,0:T(1,128)}', space=vmem, size = 0x9000, scoped, tag = 'internal scratch']
  %s0 = inlined_call_operand.vmem [shape: f32[8,4], index: 0, kind: input, shape index: {}]
  %s1 = inlined_call_operand.vmem [shape: f32[8,128], index: 1, kind: input, shape index: {}]
  %s2 = inlined_call_operand.vmem [shape: f32[8,2], index: 2, kind: output, shape index: {}]
  %s3 = sld [smem:[#allocation0]]
  $region18: #{tpu_custom_call.1} parent=0
    _
  %s5 = ssub.s32 1, %s3
  %s6 = scalar_select 0, %s5, %s3
  // Predicated region
  $region2: #{tpu_custom_call.1} parent=0 // pred_check
    _
  $region3: #{tpu_custom_call.1} parent=0 // pred_check_branch
    %8 = sbr.rel (0) target = $region5
  $region4: #{tpu_custom_call.1} parent=0 // pred_region
    _
  $region5: #{tpu_custom_call.1} parent=0 // pred_fallthru
    _
  // Predicated region
  $region6: #{tpu_custom_call.1} parent=0 // pred_check
    _
  $region7: #{tpu_custom_call.1} parent=0 // pred_check_branch
    %10 = sbr.rel (0) target = $region9
  $region8: #{tpu_custom_call.1} parent=0 // pred_region
    _
  $region9: #{tpu_custom_call.1} parent=0 // pred_fallthru
    _
  %v11 = vld [vmem:[%s0] sm:$0xff]
  %v12 = vld [vmem:[%s1] sm:$0xf]
  %v13 = vld [vmem:[%s1 + $0x4] sm:$0x1]
  %v14 = vld [vmem:[%s1 + $0x5] sm:$0x3]
  %v15 = vld [vmem:[%s1 + $0x7] sm:$0x1]
  %17 = vset.pattern.permute.xlu0 0
  %18 = vperm.xlu0 %17, %v11
  %v19 = vpop.permute.xlu0 %18
  %v21 = vperm.slane %v12, 0
  %v22 = vmul.f32 %v19, %v21
  %v23 = vperm.slane %v13, 0
  %v24 = vadd.f32 %v23, %v22
  %25 = vset.pattern.permute.xlu0 1
  %26 = vperm.xlu0 %25, %v11
  %v27 = vpop.permute.xlu0 %26
  %v29 = vperm.slane %v12, 1
  %v30 = vmul.f32 %v27, %v29
  %v31 = vadd.f32 %v24, %v30
  %32 = vset.pattern.permute.xlu0 2
  %33 = vperm.xlu0 %32, %v11
  %v34 = vpop.permute.xlu0 %33
  %v36 = vperm.slane %v12, 2
  %v37 = vmul.f32 %v34, %v36
  %v38 = vadd.f32 %v31, %v37
  %39 = vset.pattern.permute.xlu0 3
  %40 = vperm.xlu0 %39, %v11
  %v41 = vpop.permute.xlu0 %40
  %v43 = vperm.slane %v12, 3
  %v44 = vmul.f32 %v41, %v43
  %v45 = vadd.f32 %v38, %v44
  %v46 = vmax.f32 %v45, 0.0
  %v47 = vperm.slane %v14, 0
  %v48 = vmul.f32 %v46, %v47
  %49 = vadd.xlane.f32.xlu0 %v48
  %v50 = vpop.xlane.xlu0 %49
  %v51 = vperm.slane %v14, 1
  %v52 = vmul.f32 %v46, %v51
  %53 = vadd.xlane.f32.xlu0 %v52
  %v54 = vpop.xlane.xlu0 %53
  %vm55 = vcmask 7168
  %v56 = vsel %vm55, %v50, %v54
  %v57 = vperm.slane %v15, 0
  %v58 = vadd.f32 %v56, %v57
  %vm59 = vcmask 15360
  %v60 = vsel %vm59, %v58, -inf
  %v61 = vrot.slane %v60, 4
  %v62 = vmax.f32 %v60, %v61
  %v63 = vrot.slane %v62, 2
  %v64 = vmax.f32 %v62, %v63
  %v65 = vrot.slane %v64, 1
  %v66 = vmax.f32 %v64, %v65
  %v67 = vsub.f32 %v58, %v66
  %v68 = vmul.f32 %v67, 1.442695
  %v69 = vpow.pop %v68
  %v70 = vsel %vm59, %v69, 0.0
  %v71 = vrot.slane %v70, 4
  %v72 = vadd.f32 %v70, %v71
  %v73 = vrot.slane %v72, 2
  %v74 = vadd.f32 %v72, %v73
  %v75 = vrot.slane %v74, 1
  %v76 = vadd.f32 %v74, %v75
  %v77 = vrcp.pop %v76
  %v78 = vmul.f32 %v76, %v77
  %v79 = vsub.f32 1.0, %v78
  %v80 = vmul.f32 %v77, %v79
  %v81 = vadd.f32 %v77, %v80
  %vm82 = vweird.f32 %v76
  %vm83 = vweird.f32 %v77
  %vm84 = vmor %vm82, %vm83
  %v85 = vsel %vm84, %v77, %v81
  %v86 = vand.u32 2147483647, %v76
  %vm87 = vcmp.eq.f32.partialorder %v86, 8.507059e+37
  %v88 = vand.u32 %v76, 2147483648
  %v89 = vor.u32 1.1754944e-38, %v88
  %v90 = vsel %vm87, %v89, %v85
  %v91 = vmul.f32 %v69, %v90
  %92 = vst.msk [vmem:[%s2] sm:$0xff] %vm59, %v91
  // Predicated region
  $region10: #{tpu_custom_call.1} parent=0 // pred_check
    _
  $region11: #{tpu_custom_call.1} parent=0 // pred_check_branch
    %94 = sbr.rel (0) target = $region13
  $region12: #{tpu_custom_call.1} parent=0 // pred_region
    _
  $region13: #{tpu_custom_call.1} parent=0 // pred_fallthru
    _
  // Predicated region
  $region14: #{tpu_custom_call.1} parent=0 // pred_check
    _
  $region15: #{tpu_custom_call.1} parent=0 // pred_check_branch
    %96 = sbr.rel (0) target = $region17
  $region16: #{tpu_custom_call.1} parent=0 // pred_region
    _
  $region17: #{tpu_custom_call.1} parent=0 // pred_fallthru
    _

</llo_original>
